<compile_context>
chip_gen: v6e
topology: v6e:2x2x1
jax: 0.10.0
libtpu: 0.0.40
codegen_flags: <defaults>
</compile_context>

<pallas_src>
import functools

import jax
import jax.numpy as jnp
from jax.experimental import pallas as pl
from jax.experimental.pallas import tpu as pltpu

BN_EPS = 1e-5
LANE = 128
SUBLANE = 8


def _round_up(x, m):
    return ((x + m - 1) // m) * m


def _pad_to(a, shape):
    return jnp.pad(a, [(0, s - d) for d, s in zip(a.shape, shape)])


def _device_caps():
    """Generation-aware tile / VMEM budgets (safe fallback if query fails)."""
    kind = ""
    try:
        kind = jax.devices()[0].device_kind.lower()
    except Exception:
        pass
    if "v6" in kind:                 # v6e: 128 MiB VMEM, 1 TC, 256-wide MXU
        return dict(max_tile=1024, vmem_cap=100 << 20, min_tiles=1)
    if "7" in kind:                  # v7x: 64 MiB VMEM, 2 TCs share the chip
        return dict(max_tile=512, vmem_cap=48 << 20, min_tiles=2)
    if "v5 lite" in kind or "v5e" in kind:   # v5e: 128 MiB VMEM, 16 MiB scoped default
        return dict(max_tile=512, vmem_cap=100 << 20, min_tiles=1)
    return dict(max_tile=512, vmem_cap=64 << 20, min_tiles=1)


def _vmem_estimate_bytes(B, in_f, tile_f, n_dom):
    """Double-buffered DMA tiles + live f32 intermediates (conservative)."""
    bf16, f32 = 2, 4
    est = 2 * B * in_f * bf16                 # x (grid-invariant, still 2-buffered)
    est += 2 * in_f * tile_f * bf16           # W tile
    est += 2 * 2 * n_dom * tile_f * f32       # gamma + beta tiles
    est += 2 * 2 * B * n_dom * bf16           # onehot + scaled onehot^T
    est += 2 * B * tile_f * f32               # output tile
    est += 8 * B * tile_f * f32               # y / yc / stats_in / scale / shift / out
    return est


def _plan_feature_tiling(out_f, *, B, in_f, n_dom, caps):
    """Pick tile_f and the padded output width (multiple of tile_f)."""
    out_f128 = _round_up(out_f, LANE)
    tile = (min(caps["max_tile"], out_f128) // LANE) * LANE
    # v7x: keep >= 2 feature tiles so both TensorCores get work.
    if caps["min_tiles"] > 1 and out_f128 >= caps["min_tiles"] * LANE:
        tile = min(tile, max(LANE, (out_f128 // caps["min_tiles"] // LANE) * LANE))
    # Shrink until the per-layer VMEM estimate fits the generation budget.
    while tile > LANE and _vmem_estimate_bytes(B, in_f, tile, n_dom) > caps["vmem_cap"]:
        tile -= LANE
    out_f_pad = _round_up(out_f128, tile)
    return tile, out_f_pad


def _block_kernel(x_ref, w_ref, gamma_ref, beta_ref, onehot_ref, onehot_mt_ref,
                  o_ref, *, act):
    """One Decoder Block (feature tile): fc(no bias) -> dsbn(batch stats) -> act."""
    tf = o_ref.shape[-1]

    # ---- Linear: bf16 operands on the MXU, f32 accumulation ----------------
    # Bias is dropped on purpose: a per-feature constant is removed exactly by
    # the per-domain mean subtraction below, so it never reaches the output.
    y = jnp.dot(x_ref[...], w_ref[...],
                preferred_element_type=jnp.float32)                   # [B, Tf] f32

    # Pre-center by the global per-feature mean.  Exact (DSBN is invariant to
    # any per-feature shift shared by all samples) and keeps the one-pass
    # variance and the bf16 stats operands well-conditioned.
    yc = y - jnp.mean(y, axis=0, keepdims=True)                       # [B, Tf] f32

    # ---- Per-domain stats: ONE matmul for mean and E[y^2] ------------------
    # onehot_mt rows are already scaled by 1/max(count,1) in the wrapper.
    stats_in = jnp.concatenate([yc, yc * yc], axis=1).astype(jnp.bfloat16)  # [B,2Tf]
    stats = jnp.dot(onehot_mt_ref[...], stats_in,
                    preferred_element_type=jnp.float32)               # [Dp, 2Tf]
    mean_d = stats[:, :tf]
    var_d = jnp.maximum(stats[:, tf:] - mean_d * mean_d, 0.0)
    rstd_d = jax.lax.rsqrt(var_d + BN_EPS)

    # ---- Fold gamma/beta/mean into per-domain scale & shift, gather with ONE
    # matmul (onehot rows are one-hot -> pure row selection on the MXU).
    # NOTE: padded domains/features rely on gamma/beta being ZERO-padded.
    scale_d = rstd_d * gamma_ref[...]                                 # [Dp, Tf]
    shift_d = beta_ref[...] - mean_d * scale_d                        # [Dp, Tf]
    ss = jnp.dot(onehot_ref[...],
                 jnp.concatenate([scale_d, shift_d], axis=1).astype(jnp.bfloat16),
                 preferred_element_type=jnp.float32)                  # [B, 2Tf]
    out = yc * ss[:, :tf] + ss[:, tf:]

    # ---- Activation (elementwise math stays f32) ---------------------------
    if act == "relu":
        out = jnp.maximum(out, 0.0)
    elif act == "sigmoid":
        # exp + approx reciprocal both run on the (otherwise idle) EUP slot.
        # TODO(synk): switch to exact reciprocal if this feeds a BCE gradient.
        out = pl.reciprocal(1.0 + jnp.exp(-out), approx=True)
    # act == "identity": nothing

    o_ref[...] = out.astype(o_ref.dtype)


def block_forward(x, w, gamma, beta, onehot, onehot_mt, *, tile_f, act,
                  out_dtype, vmem_limit):
    """One Block via pallas_call, grid over the output-feature axis."""
    B, in_f = x.shape
    out_f = w.shape[1]
    n_dom = gamma.shape[0]
    grid = (out_f // tile_f,)

    kernel = functools.partial(_block_kernel, act=act)

    return pl.pallas_call(
        kernel,
        out_shape=jax.ShapeDtypeStruct((B, out_f), out_dtype),
        grid=grid,
        in_specs=[
            pl.BlockSpec((B, in_f), lambda j: (0, 0)),         # x (resident, bf16)
            pl.BlockSpec((in_f, tile_f), lambda j: (0, j)),    # W tile (bf16)
            pl.BlockSpec((n_dom, tile_f), lambda j: (0, j)),   # gamma tile (f32)
            pl.BlockSpec((n_dom, tile_f), lambda j: (0, j)),   # beta tile (f32)
            pl.BlockSpec((B, n_dom), lambda j: (0, 0)),        # onehot (bf16)
            pl.BlockSpec((n_dom, B), lambda j: (0, 0)),        # onehot^T / count (bf16)
        ],
        out_specs=pl.BlockSpec((B, tile_f), lambda j: (0, j)),
        compiler_params=pltpu.CompilerParams(
            dimension_semantics=("parallel",),
            vmem_limit_bytes=int(vmem_limit)),
    )(x, w, gamma, beta, onehot, onehot_mt)


def init_decoder_params(key, n_batches, n_features, latent_dim, layer_dims):
    """Deterministic parameter init mirroring the PyTorch module shapes."""
    dims = [latent_dim] + list(layer_dims) + [n_features]
    params = []
    for in_f, out_f in zip(dims[:-1], dims[1:]):
        key, kw, kb = jax.random.split(key, 3)
        bound = 1.0 / jnp.sqrt(jnp.float32(in_f))
        w = jax.random.uniform(kw, (in_f, out_f), jnp.float32, -bound, bound)
        b = jax.random.uniform(kb, (1, out_f), jnp.float32, -bound, bound)
        gamma = jnp.ones((n_batches, out_f), jnp.float32)   # per-domain BN weight
        beta = jnp.zeros((n_batches, out_f), jnp.float32)   # per-domain BN bias
        params.append((w, b, gamma, beta))
    return params


def prepare_decoder_params(params, *, batch_size):
    """One-time pad + bf16 cast + per-layer tile / VMEM planning.

    Hoisted out of the forward path so weights are not re-padded / re-cast
    (extra HBM round trips) on every call.  The bias is dropped here — it is
    exactly cancelled by the DSBN per-domain mean subtraction.
    """
    caps = _device_caps()
    n_dom = params[0][2].shape[0]
    n_dom_pad = _round_up(max(n_dom, 1), SUBLANE)

    layers = []
    in_f_pad = _round_up(params[0][0].shape[0], LANE)
    for (w, _b, gamma, beta) in params:
        out_f = w.shape[1]
        tile_f, out_f_pad = _plan_feature_tiling(
            out_f, B=batch_size, in_f=in_f_pad, n_dom=n_dom_pad, caps=caps)
        est = _vmem_estimate_bytes(batch_size, in_f_pad, tile_f, n_dom_pad)
        vmem_limit = min(caps["vmem_cap"], max(32 << 20, est + (16 << 20)))
        # Zero padding keeps padded feature columns and padded (zero-count)
        # domains exactly inert through linear + dsbn + relu.
        layers.append(dict(
            w=_pad_to(w, (in_f_pad, out_f_pad)).astype(jnp.bfloat16),
            gamma=_pad_to(gamma, (n_dom_pad, out_f_pad)),
            beta=_pad_to(beta, (n_dom_pad, out_f_pad)),
            tile_f=tile_f, out_f=out_f, out_f_pad=out_f_pad,
            in_f_pad=in_f_pad, vmem_limit=vmem_limit))
        in_f_pad = out_f_pad
    return dict(layers=layers, n_dom_pad=n_dom_pad)


def decoder_forward(prep, x, d, *, recon_loss="mse"):
    """Decoder.forward: chain of Blocks, last activation depends on recon_loss."""
    layers = prep["layers"]
    n_dom_pad = prep["n_dom_pad"]
    last_act = "identity" if recon_loss == "mse" else "sigmoid"
    n_layers = len(layers)

    # Domain one-hot (bf16, lossless 0/1) and 1/count folded into onehot^T,
    # computed ONCE and shared by every layer.
    onehot = jax.nn.one_hot(d[:, 0], n_dom_pad, dtype=jnp.float32)      # [B, Dp]
    cnt = jnp.sum(onehot, axis=0, keepdims=True)                        # [1, Dp]
    onehot_mt = (onehot / jnp.maximum(cnt, 1.0)).T                      # [Dp, B]
    onehot16 = onehot.astype(jnp.bfloat16)
    onehot_mt16 = onehot_mt.astype(jnp.bfloat16)

    B = x.shape[0]
    h = _pad_to(x, (B, layers[0]["in_f_pad"])).astype(jnp.bfloat16)

    for i, layer in enumerate(layers):
        is_last = (i + 1 == n_layers)
        act = last_act if is_last else "relu"
        out_dtype = jnp.float32 if is_last else jnp.bfloat16
        h = block_forward(h, layer["w"], layer["gamma"], layer["beta"],
                          onehot16, onehot_mt16,
                          tile_f=layer["tile_f"], act=act,
                          out_dtype=out_dtype, vmem_limit=layer["vmem_limit"])
    return h[:, :layers[-1]["out_f"]]


def _reference_forward(params, x, d, *, n_batches, recon_loss="mse"):
    """Pure-JAX reference (PyTorch-faithful masked per-domain BN, with bias).

    Uses f32 per-domain statistics and exact sigmoid; matmul operands / hidden
    activations are bf16 to match the kernel's deliberate precision choices.
    """
    last_act = "identity" if recon_loss == "mse" else "sigmoid"
    onehot = jax.nn.one_hot(d[:, 0], n_batches, dtype=jnp.float32)
    n_layers = len(params)
    h = x.astype(jnp.bfloat16)
    for i, (w, b, gamma, beta) in enumerate(params):
        y = jnp.dot(h, w.astype(jnp.bfloat16),
                    preferred_element_type=jnp.float32) + b
        out = jnp.zeros_like(y)
        for k in range(n_batches):
            mask = onehot[:, k:k + 1]
            cnt = jnp.maximum(jnp.sum(mask), 1.0)
            mean = jnp.sum(y * mask, axis=0, keepdims=True) / cnt
            var = jnp.sum(((y - mean) ** 2) * mask, axis=0, keepdims=True) / cnt
            norm = (y - mean) / jnp.sqrt(var + BN_EPS)
            out = out + mask * (norm * gamma[k:k + 1] + beta[k:k + 1])
        if i + 1 < n_layers:
            h = jnp.maximum(out, 0.0).astype(jnp.bfloat16)
        else:
            h = jax.nn.sigmoid(out) if last_act == "sigmoid" else out
    return h


if __name__ == "__main__":
    # Small config consistent with the module: latent -> hidden -> n_features
    n_batches = 2      # number of domains (dsbn)
    n_features = 16    # reconstruction width
    latent_dim = 8
    layer_dims = [32]
    batch_size = 16

    key = jax.random.PRNGKey(0)
    key, kx, kd, kp = jax.random.split(key, 4)

    x = jax.random.normal(kx, (batch_size, latent_dim), jnp.float32)
    d = jax.random.randint(kd, (batch_size, 1), 0, n_batches, jnp.int32)

    params = init_decoder_params(kp, n_batches, n_features, latent_dim, layer_dims)
    prep = prepare_decoder_params(params, batch_size=batch_size)

    # Tolerance covers bf16 MXU operands, bf16 intermediate activations and
    # bf16 stats/gather operands (deliberate perf choices); real bugs produce
    # O(1) errors.
    for recon_loss in ("mse", "bce"):
        out = decoder_forward(prep, x, d, recon_loss=recon_loss)
        out = jax.block_until_ready(out)
        ref = _reference_forward(params, x, d, n_batches=n_batches,
                                 recon_loss=recon_loss)
        assert out.shape == (batch_size, n_features)
        assert jnp.allclose(out, ref, atol=5e-2, rtol=5e-2), \
            f"mismatch vs reference ({recon_loss})"

    print("KERNEL_OK")
</pallas_src>

<mosaic_0001>
module attributes {stable_mosaic.version = 11 : i64} {
  func.func @_block_kernel(%arg0: i32, %arg1: memref<16x128xbf16, #tpu.memory_space<vmem>>, %arg2: memref<128x128xbf16, #tpu.memory_space<vmem>>, %arg3: memref<8x128xf32, #tpu.memory_space<vmem>>, %arg4: memref<8x128xf32, #tpu.memory_space<vmem>>, %arg5: memref<16x8xbf16, #tpu.memory_space<vmem>>, %arg6: memref<8x16xbf16, #tpu.memory_space<vmem>>, %arg7: memref<16x128xbf16, #tpu.memory_space<vmem>>) attributes {dimension_semantics = [#tpu.dimension_semantics<parallel>], iteration_bounds = array<i64: 1>, scalar_prefetch = 0 : i64, scratch_operands = 0 : i64, tpu.core_type = #tpu.core_type<tc>, window_params = [{pipeline_mode = #tpu.pipeline_mode<synchronous>, transform_indices = @transform_0, window_bounds = array<i64: 16, 128>}, {transform_indices = @transform_1, window_bounds = array<i64: 128, 128>}, {transform_indices = @transform_2, window_bounds = array<i64: 8, 128>}, {transform_indices = @transform_3, window_bounds = array<i64: 8, 128>}, {pipeline_mode = #tpu.pipeline_mode<synchronous>, transform_indices = @transform_4, window_bounds = array<i64: 16, 8>}, {pipeline_mode = #tpu.pipeline_mode<synchronous>, transform_indices = @transform_5, window_bounds = array<i64: 8, 16>}, {transform_indices = @transform_6, window_bounds = array<i64: 16, 128>}]} {
    %c0 = arith.constant 0 : index
    %c0_0 = arith.constant 0 : index
    %0 = vector.load %arg1[%c0, %c0_0] : memref<16x128xbf16, #tpu.memory_space<vmem>>, vector<16x128xbf16>
    %c0_1 = arith.constant 0 : index
    %c0_2 = arith.constant 0 : index
    %1 = vector.load %arg2[%c0_1, %c0_2] : memref<128x128xbf16, #tpu.memory_space<vmem>>, vector<128x128xbf16>
    %cst = arith.constant dense<0.000000e+00> : vector<16x128xf32>
    %2 = tpu.matmul %0, %1, %cst {dimension_numbers = #tpu.dot_dimension_numbers<[1], [0], [0], [1], [0, 0, 1, 1], [], []>} : vector<16x128xbf16>, vector<128x128xbf16>, vector<16x128xf32> -> vector<16x128xf32>
    %cst_3 = arith.constant dense<0.000000e+00> : vector<128xf32>
    %3 = vector.multi_reduction <add>, %2, %cst_3 [0] : vector<16x128xf32> to vector<128xf32>
    %4 = vector.shape_cast %3 : vector<128xf32> to vector<1x128xf32>
    %cst_4 = arith.constant 1.600000e+01 : f32
    %5 = vector.broadcast %cst_4 : f32 to vector<1x128xf32>
    %6 = arith.divf %4, %5 : vector<1x128xf32>
    %7 = vector.broadcast %6 : vector<1x128xf32> to vector<16x128xf32>
    %8 = arith.subf %2, %7 : vector<16x128xf32>
    %9 = arith.mulf %8, %8 : vector<16x128xf32>
    %10 = tpu.concatenate %8, %9 in 1 : vector<16x128xf32>, vector<16x128xf32> -> vector<16x256xf32>
    %11 = arith.truncf %10 : vector<16x256xf32> to vector<16x256xbf16>
    %c0_5 = arith.constant 0 : index
    %c0_6 = arith.constant 0 : index
    %12 = vector.load %arg6[%c0_5, %c0_6] : memref<8x16xbf16, #tpu.memory_space<vmem>>, vector<8x16xbf16>
    %cst_7 = arith.constant dense<0.000000e+00> : vector<8x256xf32>
    %13 = tpu.matmul %12, %11, %cst_7 {dimension_numbers = #tpu.dot_dimension_numbers<[1], [0], [0], [1], [0, 0, 1, 1], [], []>} : vector<8x16xbf16>, vector<16x256xbf16>, vector<8x256xf32> -> vector<8x256xf32>
    %14 = vector.extract_strided_slice %13 {offsets = [0, 0], sizes = [8, 128], strides = [1, 1]} : vector<8x256xf32> to vector<8x128xf32>
    %15 = vector.extract_strided_slice %13 {offsets = [0, 128], sizes = [8, 128], strides = [1, 1]} : vector<8x256xf32> to vector<8x128xf32>
    %16 = arith.mulf %14, %14 : vector<8x128xf32>
    %17 = arith.subf %15, %16 : vector<8x128xf32>
    %cst_8 = arith.constant 0.000000e+00 : f32
    %18 = vector.broadcast %cst_8 : f32 to vector<8x128xf32>
    %19 = arith.maximumf %17, %18 : vector<8x128xf32>
    %cst_9 = arith.constant 9.99999974E-6 : f32
    %20 = vector.broadcast %cst_9 : f32 to vector<8x128xf32>
    %21 = arith.addf %19, %20 : vector<8x128xf32>
    %22 = math.rsqrt %21 : vector<8x128xf32>
    %c0_10 = arith.constant 0 : index
    %c0_11 = arith.constant 0 : index
    %23 = vector.load %arg3[%c0_10, %c0_11] : memref<8x128xf32, #tpu.memory_space<vmem>>, vector<8x128xf32>
    %24 = arith.mulf %22, %23 : vector<8x128xf32>
    %c0_12 = arith.constant 0 : index
    %c0_13 = arith.constant 0 : index
    %25 = vector.load %arg4[%c0_12, %c0_13] : memref<8x128xf32, #tpu.memory_space<vmem>>, vector<8x128xf32>
    %26 = arith.mulf %14, %24 : vector<8x128xf32>
    %27 = arith.subf %25, %26 : vector<8x128xf32>
    %c0_14 = arith.constant 0 : index
    %c0_15 = arith.constant 0 : index
    %28 = vector.load %arg5[%c0_14, %c0_15] : memref<16x8xbf16, #tpu.memory_space<vmem>>, vector<16x8xbf16>
    %29 = tpu.concatenate %24, %27 in 1 : vector<8x128xf32>, vector<8x128xf32> -> vector<8x256xf32>
    %30 = arith.truncf %29 : vector<8x256xf32> to vector<8x256xbf16>
    %cst_16 = arith.constant dense<0.000000e+00> : vector<16x256xf32>
    %31 = tpu.matmul %28, %30, %cst_16 {dimension_numbers = #tpu.dot_dimension_numbers<[1], [0], [0], [1], [0, 0, 1, 1], [], []>} : vector<16x8xbf16>, vector<8x256xbf16>, vector<16x256xf32> -> vector<16x256xf32>
    %32 = vector.extract_strided_slice %31 {offsets = [0, 0], sizes = [16, 128], strides = [1, 1]} : vector<16x256xf32> to vector<16x128xf32>
    %33 = arith.mulf %8, %32 : vector<16x128xf32>
    %34 = vector.extract_strided_slice %31 {offsets = [0, 128], sizes = [16, 128], strides = [1, 1]} : vector<16x256xf32> to vector<16x128xf32>
    %35 = arith.addf %33, %34 : vector<16x128xf32>
    %cst_17 = arith.constant 0.000000e+00 : f32
    %36 = vector.broadcast %cst_17 : f32 to vector<16x128xf32>
    %37 = arith.maximumf %35, %36 : vector<16x128xf32>
    %38 = arith.truncf %37 : vector<16x128xf32> to vector<16x128xbf16>
    %c0_18 = arith.constant 0 : index
    %c0_19 = arith.constant 0 : index
    %39 = vector.load %arg7[%c0_18, %c0_19] : memref<16x128xbf16, #tpu.memory_space<vmem>>, vector<16x128xbf16>
    tpu.vector_store %arg7[%c0_18, %c0_19], %38 {strides = array<i32>} : memref<16x128xbf16, #tpu.memory_space<vmem>>, vector<16x128xbf16>,
    return
  }
  func.func @transform_0(%arg0: i32) -> (i32, i32) {
    %c0_i32 = arith.constant 0 : i32
    %c0_i32_0 = arith.constant 0 : i32
    %c0_i32_1 = arith.constant 0 : i32
    return %c0_i32, %c0_i32_0 : i32, i32
  }
  func.func @transform_1(%arg0: i32) -> (i32, i32) {
    %c0_i32 = arith.constant 0 : i32
    %c0_i32_0 = arith.constant 0 : i32
    return %c0_i32, %arg0 : i32, i32
  }
  func.func @transform_2(%arg0: i32) -> (i32, i32) {
    %c0_i32 = arith.constant 0 : i32
    %c0_i32_0 = arith.constant 0 : i32
    return %c0_i32, %arg0 : i32, i32
  }
  func.func @transform_3(%arg0: i32) -> (i32, i32) {
    %c0_i32 = arith.constant 0 : i32
    %c0_i32_0 = arith.constant 0 : i32
    return %c0_i32, %arg0 : i32, i32
  }
  func.func @transform_4(%arg0: i32) -> (i32, i32) {
    %c0_i32 = arith.constant 0 : i32
    %c0_i32_0 = arith.constant 0 : i32
    %c0_i32_1 = arith.constant 0 : i32
    return %c0_i32, %c0_i32_0 : i32, i32
  }
  func.func @transform_5(%arg0: i32) -> (i32, i32) {
    %c0_i32 = arith.constant 0 : i32
    %c0_i32_0 = arith.constant 0 : i32
    %c0_i32_1 = arith.constant 0 : i32
    return %c0_i32, %c0_i32_0 : i32, i32
  }
  func.func @transform_6(%arg0: i32) -> (i32, i32) {
    %c0_i32 = arith.constant 0 : i32
    %c0_i32_0 = arith.constant 0 : i32
    return %c0_i32, %arg0 : i32, i32
  }
}

</mosaic_0001>

<llo_original>
// kernel: tpu_custom_call.1
$region0: #{tpu_custom_call.1}
  #allocation0 [shape = 'u32[]', space=smem, size = 0x4, offset = 0x4, fixed_abs, tag = 'smem constant byte address 0x4 - core index']
  #allocation1 [shape = 'u32[144,128]{1,0:T(1,128)}', space=vmem, size = 0x12000, scoped, tag = 'internal scratch']
  %s0 = inlined_call_operand.vmem [shape: bf16[16,128], index: 0, kind: input, shape index: {}]
  %s1 = inlined_call_operand.hbm [shape: bf16[128,128], index: 1, kind: input, shape index: {}]
  %s2 = inlined_call_operand.hbm [shape: f32[8,128], index: 2, kind: input, shape index: {}]
  %s3 = inlined_call_operand.vmem [shape: f32[8,128], index: 3, kind: input, shape index: {}]
  %s4 = inlined_call_operand.vmem [shape: bf16[16,8], index: 4, kind: input, shape index: {}]
  %s5 = inlined_call_operand.vmem [shape: bf16[8,16], index: 5, kind: input, shape index: {}]
  %s6 = inlined_call_operand.hbm [shape: bf16[16,128], index: 6, kind: output, shape index: {}]
  %s7 = sld [smem:[#allocation0]]
  $region42: #{tpu_custom_call.1} parent=0
    _
  %s9 = ssub.s32 1, %s7
  %s10 = scalar_select 0, %s9, %s7
  $region1: #{tpu_custom_call.1} parent=0
    #allocation2 [shape = 'u8[32768]{0}', space=vmem, size = 0x8000, scoped, tag = 'input window, operand 1, single buffered']
    #allocation3 [shape = 's32[1]{0}', space=sflag, size = 0x4, scoped, tag = 'scoped memory for tpu_custom_call.1']
    #allocation4 [shape = 's32[1]{0}', space=sflag, size = 0x4, scoped, tag = 'scoped memory for tpu_custom_call.1']
    #allocation5 [shape = 'u8[4096]{0}', space=vmem, size = 0x1000, scoped, tag = 'input window, operand 2, single buffered']
    #allocation6 [shape = 's32[1]{0}', space=sflag, size = 0x4, scoped, tag = 'scoped memory for tpu_custom_call.1']
    #allocation7 [shape = 'u8[4096]{0}', space=vmem, size = 0x1000, scoped, tag = 'output window, operand 0, single buffered']
    %11 = vsyncpa [#allocation3], 0
    %12 = vsyncpa [#allocation6], 0
    %13 = vsyncpa [#allocation4], 0
    // Predicated region
    $region2: #{tpu_custom_call.1} parent=1 // pred_check
      _
    $region3: #{tpu_custom_call.1} parent=1 // pred_check_branch
      %15 = sbr.rel (0) target = $region5
    $region4: #{tpu_custom_call.1} parent=1 // pred_region
      _
    $region5: #{tpu_custom_call.1} parent=1 // pred_fallthru
      _
    // Predicated region
    $region6: #{tpu_custom_call.1} parent=1 // pred_check
      _
    $region7: #{tpu_custom_call.1} parent=1 // pred_check_branch
      %17 = sbr.rel (0) target = $region9
    $region8: #{tpu_custom_call.1} parent=1 // pred_region
      %s19 = ssub.s32 1024, 1024
      %20 = vsyncadd [#allocation3], %s19
      %s21 = sshll.u32 [#allocation2], 4
      %s22 = int_to_ptr.vmem [resolvable:$true] %s21
      %27 = dma.hbm_to_vmem [thread:$0]  %s1, 1024, %s22, [#allocation3], 64, 64, 4
    $region9: #{tpu_custom_call.1} parent=1 // pred_fallthru
      _
    // Predicated region
    $region10: #{tpu_custom_call.1} parent=1 // pred_check
      _
    $region11: #{tpu_custom_call.1} parent=1 // pred_check_branch
      %29 = sbr.rel (0) target = $region13
    $region12: #{tpu_custom_call.1} parent=1 // pred_region
      %s31 = ssub.s32 128, 128
      %32 = vsyncadd [#allocation6], %s31
      %s34 = sshll.u32 [#allocation5], 4
      %s35 = int_to_ptr.vmem [resolvable:$true] %s34
      %37 = dma.hbm_to_vmem [thread:$0]  %s2, 128, %s35, [#allocation6]
    $region13: #{tpu_custom_call.1} parent=1 // pred_fallthru
      _
    // Predicated region
    $region14: #{tpu_custom_call.1} parent=1 // pred_check
      _
    $region15: #{tpu_custom_call.1} parent=1 // pred_check_branch
      %39 = sbr.rel (0) target = $region17
    $region16: #{tpu_custom_call.1} parent=1 // pred_region
      _
    $region17: #{tpu_custom_call.1} parent=1 // pred_fallthru
      _
    // Predicated region
    $region18: #{tpu_custom_call.1} parent=1 // pred_check
      _
    $region19: #{tpu_custom_call.1} parent=1 // pred_check_branch
      %41 = sbr.rel (0) target = $region21
    $region20: #{tpu_custom_call.1} parent=1 // pred_region
      _
    $region21: #{tpu_custom_call.1} parent=1 // pred_fallthru
      _
    // Predicated region
    $region22: #{tpu_custom_call.1} parent=1 // pred_check
      _
    $region23: #{tpu_custom_call.1} parent=1 // pred_check_branch
      %43 = sbr.rel (0) target = $region25
    $region24: #{tpu_custom_call.1} parent=1 // pred_region
      _
    $region25: #{tpu_custom_call.1} parent=1 // pred_fallthru
      _
    // Predicated region
    $region26: #{tpu_custom_call.1} parent=1 // pred_check
      _
    $region27: #{tpu_custom_call.1} parent=1 // pred_check_branch
      %45 = sbr.rel (0) target = $region29
    $region28: #{tpu_custom_call.1} parent=1 // pred_region
      %46 = dma.done [#allocation3], 1024
    $region29: #{tpu_custom_call.1} parent=1 // pred_fallthru
      _
    // Predicated region
    $region30: #{tpu_custom_call.1} parent=1 // pred_check
      _
    $region31: #{tpu_custom_call.1} parent=1 // pred_check_branch
      %48 = sbr.rel (0) target = $region33
    $region32: #{tpu_custom_call.1} parent=1 // pred_region
      %49 = dma.done [#allocation6], 128
    $region33: #{tpu_custom_call.1} parent=1 // pred_fallthru
      _
    %v51 = vld [vmem:[%s0] sm:$0xf]
    %v52 = vld [vmem:[%s0 + $0x4] sm:$0xf]
    %v53 = vld [vmem:[#allocation2] sm:$0xf]
    %v54 = vld [vmem:[#allocation2 + $0x4] sm:$0xf]
    %v55 = vld [vmem:[#allocation2 + $0x8] sm:$0xf]
    %v56 = vld [vmem:[#allocation2 + $0xc] sm:$0xf]
    %v57 = vld [vmem:[#allocation2 + $0x10] sm:$0xf]
    %v58 = vld [vmem:[#allocation2 + $0x14] sm:$0xf]
    %v59 = vld [vmem:[#allocation2 + $0x18] sm:$0xf]
    %v60 = vld [vmem:[#allocation2 + $0x1c] sm:$0xf]
    %v61 = vld [vmem:[#allocation2 + $0x20] sm:$0xf]
    %v62 = vld [vmem:[#allocation2 + $0x24] sm:$0xf]
    %v63 = vld [vmem:[#allocation2 + $0x28] sm:$0xf]
    %v64 = vld [vmem:[#allocation2 + $0x2c] sm:$0xf]
    %v65 = vld [vmem:[#allocation2 + $0x30] sm:$0xf]
    %v66 = vld [vmem:[#allocation2 + $0x34] sm:$0xf]
    %v67 = vld [vmem:[#allocation2 + $0x38] sm:$0xf]
    %v68 = vld [vmem:[#allocation2 + $0x3c] sm:$0xf]
    %v71 = vunpack.c.l.b16 %v51
    %v72 = vunpack.c.l.b16 %v52
    %v73 = vpack.c.b16 %v72, %v71
    %v91 = vunpack.c.l.b16 %v53
    %v92 = vunpack.c.l.b16 %v54
    %v93 = vunpack.c.l.b16 %v55
    %v94 = vunpack.c.l.b16 %v56
    %v95 = vunpack.c.l.b16 %v57
    %v96 = vunpack.c.l.b16 %v58
    %v97 = vunpack.c.l.b16 %v59
    %v98 = vunpack.c.l.b16 %v60
    %v99 = vunpack.c.l.b16 %v61
    %v100 = vunpack.c.l.b16 %v62
    %v101 = vunpack.c.l.b16 %v63
    %v102 = vunpack.c.l.b16 %v64
    %v103 = vunpack.c.l.b16 %v65
    %v104 = vunpack.c.l.b16 %v66
    %v105 = vunpack.c.l.b16 %v67
    %v106 = vunpack.c.l.b16 %v68
    %v107 = vpack.c.b16 %v92, %v91
    %v108 = vpack.c.b16 %v94, %v93
    %v109 = vpack.c.b16 %v96, %v95
    %v110 = vpack.c.b16 %v98, %v97
    %v111 = vpack.c.b16 %v100, %v99
    %v112 = vpack.c.b16 %v102, %v101
    %v113 = vpack.c.b16 %v104, %v103
    %v114 = vpack.c.b16 %v106, %v105
    %123 = vmatprep.subr.bf16.mxu0 0
    %124 = vmatpush1.bf16.msra.mxu0 %v114
    %125 = vmatprep.subr.bf16.mxu0 0
    %126 = vmatpush1.bf16.msra.mxu0 %v113
    %127 = vmatprep.subr.bf16.mxu0 0
    %128 = vmatpush1.bf16.msra.mxu0 %v112
    %129 = vmatprep.subr.bf16.mxu0 0
    %130 = vmatpush1.bf16.msra.mxu0 %v111
    %131 = vmatprep.subr.bf16.mxu0 0
    %132 = vmatpush1.bf16.msra.mxu0 %v110
    %133 = vmatprep.subr.bf16.mxu0 0
    %134 = vmatpush1.bf16.msra.mxu0 %v109
    %135 = vmatprep.subr.bf16.mxu0 0
    %136 = vmatpush1.bf16.msra.mxu0 %v108
    %137 = vmatprep.subr.bf16.mxu0 0
    %138 = vmatpush1.bf16.msra.mxu0 %v107
    %139 = vmatprep.subr.bf16.mxu0 0
    %140 = vmatpush2.bf16.msra.mxu0 0
    %141 = vmatprep.subr.bf16.mxu0 0
    %142 = vmatpush2.bf16.msra.mxu0 0
    %143 = vmatprep.subr.bf16.mxu0 0
    %144 = vmatpush2.bf16.msra.mxu0 0
    %145 = vmatprep.subr.bf16.mxu0 0
    %146 = vmatpush2.bf16.msra.mxu0 0
    %147 = vmatprep.subr.bf16.mxu0 0
    %148 = vmatpush2.bf16.msra.mxu0 0
    %149 = vmatprep.subr.bf16.mxu0 0
    %150 = vmatpush2.bf16.msra.mxu0 0
    %151 = vmatprep.subr.bf16.mxu0 0
    %152 = vmatpush2.bf16.msra.mxu0 0
    %153 = vmatprep.subr.bf16.mxu0 0
    %154 = vmatpush2.bf16.msra.mxu0 0
    %155 = vmatprep.mubr.bf16.mxu0 0
    %156 = vmatmul.mubr.bf16.gmra.mxu0 %v73
    %v157 = vpop.f32.mrf.mxu0
    %v158 = vadd.f32 0.0, %v157
    %v159 = vpop.f32.mrf.mxu0
    %v160 = vpop.f32.mrf.mxu0
    %v161 = vadd.f32 0.0, %v160
    %v162 = vpop.f32.mrf.mxu0
    %163 = vdwg.mxu0
    %v164 = vadd.f32 %v158, %v161
    %v165 = vrot.slane %v164, 4
    %v166 = vadd.f32 %v164, %v165
    %v167 = vrot.slane %v166, 2
    %v168 = vadd.f32 %v166, %v167
    %v169 = vrot.slane %v168, 1
    %v170 = vadd.f32 %v168, %v169
    %v171 = vrcp.pop 16.0
    %v172 = vmul.f32 %v170, %v171
    %v173 = vsub.f32 %v158, %v172
    %v174 = vsub.f32 %v161, %v172
    %v175 = vmul.f32 %v173, %v173
    %v176 = vmul.f32 %v174, %v174
    %v177 = vpack.c.bf16 %v174, %v173
    %v178 = vpack.c.bf16 %v176, %v175
    %v179 = vld [vmem:[%s5] sm:$0xf]
    %vm180 = vcmask 130048
    %v182 = vsel %vm180, %v179, 0
    %184 = vmatprep.subr.bf16.mxu0 0
    %185 = vmatpush1.bf16.msra.mxu0 0
    %186 = vmatprep.subr.bf16.mxu0 0
    %187 = vmatpush1.bf16.msra.mxu0 0
    %188 = vmatprep.subr.bf16.mxu0 0
    %189 = vmatpush1.bf16.msra.mxu0 0
    %190 = vmatprep.subr.bf16.mxu0 0
    %191 = vmatpush1.bf16.msra.mxu0 0
    %192 = vmatprep.subr.bf16.mxu0 0
    %193 = vmatpush1.bf16.msra.mxu0 0
    %194 = vmatprep.subr.bf16.mxu0 0
    %195 = vmatpush1.bf16.msra.mxu0 0
    %196 = vmatprep.subr.bf16.mxu0 0
    %197 = vmatpush1.bf16.msra.mxu0 0
    %198 = vmatprep.subr.bf16.mxu0 %v178
    %199 = vmatpush1.bf16.msra.mxu0 %v177
    %200 = vmatprep.subr.bf16.mxu0 0
    %201 = vmatpush2.bf16.msra.mxu0 0
    %202 = vmatprep.subr.bf16.mxu0 0
    %203 = vmatpush2.bf16.msra.mxu0 0
    %204 = vmatprep.subr.bf16.mxu0 0
    %205 = vmatpush2.bf16.msra.mxu0 0
    %206 = vmatprep.subr.bf16.mxu0 0
    %207 = vmatpush2.bf16.msra.mxu0 0
    %208 = vmatprep.subr.bf16.mxu0 0
    %209 = vmatpush2.bf16.msra.mxu0 0
    %210 = vmatprep.subr.bf16.mxu0 0
    %211 = vmatpush2.bf16.msra.mxu0 0
    %212 = vmatprep.subr.bf16.mxu0 0
    %213 = vmatpush2.bf16.msra.mxu0 0
    %214 = vmatprep.subr.bf16.mxu0 0
    %215 = vmatpush2.bf16.msra.mxu0 0
    %216 = vmatprep.mubr.bf16.mxu0 0
    %217 = vmatmul.mubr.bf16.gmra.mxu0 %v182
    %v218 = vpop.f32.mrf.mxu0
    %v219 = vadd.f32 0.0, %v218
    %v220 = vpop.f32.mrf.mxu0
    %v221 = vadd.f32 0.0, %v220
    %v222 = vpop.f32.mrf.mxu0
    %v223 = vpop.f32.mrf.mxu0
    %224 = vdwg.mxu0
    %v225 = vmul.f32 %v219, %v219
    %v226 = vsub.f32 %v221, %v225
    %v227 = vmax.f32 %v226, 0.0
    %v228 = vadd.f32 %v227, 1e-05
    %v229 = vrsqrt.pop %v228
    %v230 = vld [vmem:[#allocation5] sm:$0xff]
    %v231 = vmul.f32 %v229, %v230
    %v232 = vld [vmem:[%s3] sm:$0xff]
    %v233 = vmul.f32 %v219, %v231
    %v234 = vsub.f32 %v232, %v233
    %v235 = vld [vmem:[%s4] sm:$0xf]
    %v236 = vld [vmem:[%s4 + $0x4] sm:$0xf]
    %v237 = vpack.c.bf16 %v231, %v231
    %v238 = vpack.c.bf16 %v234, %v234
    %v241 = vunpack.c.l.b16 %v235
    %v242 = vunpack.c.l.b16 %v236
    %v243 = vpack.c.b16 %v242, %v241
    %vm244 = vcmask 64512
    %v246 = vsel %vm244, %v243, 0
    %vm248 = vcmask 1043456
    %v250 = vsel %vm248, %v237, 0
    %v253 = vsel %vm248, %v238, 0
    %255 = vmatprep.subr.bf16.mxu0 0
    %256 = vmatpush1.bf16.msra.mxu0 0
    %257 = vmatprep.subr.bf16.mxu0 0
    %258 = vmatpush1.bf16.msra.mxu0 0
    %259 = vmatprep.subr.bf16.mxu0 0
    %260 = vmatpush1.bf16.msra.mxu0 0
    %261 = vmatprep.subr.bf16.mxu0 0
    %262 = vmatpush1.bf16.msra.mxu0 0
    %263 = vmatprep.subr.bf16.mxu0 0
    %264 = vmatpush1.bf16.msra.mxu0 0
    %265 = vmatprep.subr.bf16.mxu0 0
    %266 = vmatpush1.bf16.msra.mxu0 0
    %267 = vmatprep.subr.bf16.mxu0 0
    %268 = vmatpush1.bf16.msra.mxu0 0
    %269 = vmatprep.subr.bf16.mxu0 %v253
    %270 = vmatpush1.bf16.msra.mxu0 %v250
    %271 = vmatprep.subr.bf16.mxu0 0
    %272 = vmatpush2.bf16.msra.mxu0 0
    %273 = vmatprep.subr.bf16.mxu0 0
    %274 = vmatpush2.bf16.msra.mxu0 0
    %275 = vmatprep.subr.bf16.mxu0 0
    %276 = vmatpush2.bf16.msra.mxu0 0
    %277 = vmatprep.subr.bf16.mxu0 0
    %278 = vmatpush2.bf16.msra.mxu0 0
    %279 = vmatprep.subr.bf16.mxu0 0
    %280 = vmatpush2.bf16.msra.mxu0 0
    %281 = vmatprep.subr.bf16.mxu0 0
    %282 = vmatpush2.bf16.msra.mxu0 0
    %283 = vmatprep.subr.bf16.mxu0 0
    %284 = vmatpush2.bf16.msra.mxu0 0
    %285 = vmatprep.subr.bf16.mxu0 0
    %286 = vmatpush2.bf16.msra.mxu0 0
    %287 = vmatprep.mubr.bf16.mxu0 0
    %288 = vmatmul.mubr.bf16.gmra.mxu0 %v246
    %v289 = vpop.f32.mrf.mxu0
    %v290 = vadd.f32 0.0, %v289
    %v291 = vpop.f32.mrf.mxu0
    %v292 = vadd.f32 0.0, %v291
    %v293 = vpop.f32.mrf.mxu0
    %v294 = vadd.f32 0.0, %v293
    %v295 = vpop.f32.mrf.mxu0
    %v296 = vadd.f32 0.0, %v295
    %297 = vdwg.mxu0
    %v298 = vmul.f32 %v173, %v290
    %v299 = vmul.f32 %v174, %v294
    %v300 = vadd.f32 %v298, %v292
    %v301 = vadd.f32 %v299, %v296
    %v302 = vmax.f32 %v300, 0.0
    %v303 = vmax.f32 %v301, 0.0
    %v304 = vpack.c.bf16 %v303, %v302
    %v306 = vunpack.c.l.b16 %v304
    %v307 = vunpack.c.h.b16 %v304
    %v308 = vpack.c.b16 %v306, %v306
    %v309 = vpack.c.b16 %v307, %v307
    %312 = vst [vmem:[#allocation7] sm:$0xf] %v308
    %313 = vst [vmem:[#allocation7 + $0x4] sm:$0xf] %v309
    // Predicated region
    $region34: #{tpu_custom_call.1} parent=1 // pred_check
      _
    $region35: #{tpu_custom_call.1} parent=1 // pred_check_branch
      %315 = sbr.rel (0) target = $region37
    $region36: #{tpu_custom_call.1} parent=1 // pred_region
      %s317 = ssub.s32 128, 128
      %318 = vsyncadd [#allocation4], %s317
      %s319 = sshll.u32 [#allocation7], 4
      %s320 = int_to_ptr.vmem [resolvable:$true] %s319
      %325 = dma.vmem_to_hbm [thread:$0]  %s320, 128, %s6, [#allocation4], 64, 64, 4
    $region37: #{tpu_custom_call.1} parent=1 // pred_fallthru
      _
    // Predicated region
    $region38: #{tpu_custom_call.1} parent=1 // pred_check
      _
    $region39: #{tpu_custom_call.1} parent=1 // pred_check_branch
      %327 = sbr.rel (0) target = $region41
    $region40: #{tpu_custom_call.1} parent=1 // pred_region
      %328 = dma.done [#allocation4], 128
    $region41: #{tpu_custom_call.1} parent=1 // pred_fallthru
      _
    %329 = vsyncpa [#allocation3], 1
    %330 = vsyncpa [#allocation6], 1
    %331 = vsyncpa [#allocation4], 1

</llo_original>
